<compile_context>
chip_gen: v7x
topology: tpu7x:2x2x1
jax: 0.10.0
libtpu: 0.0.40
codegen_flags: <defaults>
</compile_context>

<pallas_src>
import functools

import jax
import jax.numpy as jnp
import numpy as np
from jax.experimental import pallas as pl
from jax.experimental.pallas import tpu as pltpu


def _round_up(x, m):
    return ((x + m - 1) // m) * m


# ----------------------------- Pallas kernels --------------------------------
def _dmaq_adv_kernel(Ap, H, KAp, off_d, is_minus_one, weighted_head, *refs):
    """Adv path (is_v=False), batch-in-lanes.

    x_ref      : (P,  TB)  rows = [states | actions | pad | (qs - max_q) | pad]
    w1t_ref    : (N1, P )  fused first layer, rows = [h(H)? | key | ag | ac]
    z = w1t @ x: (N1, TB)
    out_ref    : (1,  TB)
    """
    if weighted_head:
        x_ref, w1t_ref, b1t_ref, w2t_ref, b2t_ref, esum_ref, out_ref = refs
        nh = H
    else:
        x_ref, w1t_ref, b1t_ref, esum_ref, out_ref = refs
        nh = 0

    x = x_ref[...]                                                # (P, TB)
    z = (jnp.dot(w1t_ref[...], x, preferred_element_type=jnp.float32)
         + b1t_ref[...])                                          # (N1, TB)

    # DMAQ_SI_Weight (adv_hypernet_layers == 1), all lane-dense in the batch.
    key_e = jnp.abs(z[nh:nh + KAp, :]) + 1e-10                    # (KAp, TB)
    ag = jax.nn.sigmoid(z[nh + KAp:nh + 2 * KAp, :])              # (KAp, TB)
    ac = jax.nn.sigmoid(z[nh + 2 * KAp:nh + 3 * KAp, :])          # (KAp, TB)
    # Sum over the num_kernel axis via a constant 0/1 matrix on the MXU.
    adv_w = jnp.dot(esum_ref[...], key_e * ag * ac,
                    preferred_element_type=jnp.float32)           # (Ap, TB)

    d = x[off_d:off_d + Ap, :]                                    # qs - max_q
    if weighted_head:
        # (w_final*qs + v) - (w_final*max_q + v) == w_final * (qs - max_q)
        h2 = jnp.maximum(z[:H, :], 0.0)
        w_final = jnp.abs(
            jnp.dot(w2t_ref[...], h2, preferred_element_type=jnp.float32)
            + b2t_ref[...]) + 1e-10                               # (Ap, TB)
        adv_q = w_final * d
    else:
        adv_q = d

    c = 1.0 if is_minus_one else 0.0
    # Padded agent rows have adv_q == 0, so they contribute nothing.
    out_ref[...] = jnp.sum(adv_q * (adv_w - c), axis=0, keepdims=True)


def _dmaq_v_kernel(Ap, H, off_q, weighted_head, *refs):
    """V path (is_v=True), batch-in-lanes.  Output is the lane-dense row sum."""
    if weighted_head:
        x_ref, w1t_ref, b1t_ref, w2t_ref, b2t_ref, out_ref = refs
        x = x_ref[...]                                            # (P, TB)
        qs = x[off_q:off_q + Ap, :]                               # (Ap, TB)
        z = jnp.maximum(
            jnp.dot(w1t_ref[...], x, preferred_element_type=jnp.float32)
            + b1t_ref[...], 0.0)                                  # (2H, TB)
        wv = (jnp.dot(w2t_ref[...], z, preferred_element_type=jnp.float32)
              + b2t_ref[...])                                     # (2Ap, TB)
        w_final = jnp.abs(wv[:Ap, :]) + 1e-10
        v = wv[Ap:2 * Ap, :]
        qs = w_final * qs + v                                     # pad rows -> 0
    else:
        x_ref, out_ref = refs
        qs = x_ref[...]                                           # (Ap, TB)
    out_ref[...] = jnp.sum(qs, axis=0, keepdims=True)


# --------------------------- Weight packing -----------------------------------
def _pack_adv_params(params, cfg):
    A, S, AD = cfg["n_agents"], cfg["state_dim"], cfg["action_dim"]
    H, K = cfg["hypernet_embed"], cfg["num_kernel"]
    wh = bool(cfg["weighted_head"])
    f32 = jnp.float32

    Ap = _round_up(A, 8)
    KA = K * A
    KAp = _round_up(KA, 8)
    off_d = _round_up(S + AD, 8)
    P = off_d + Ap
    nh = H if wh else 0
    N1 = nh + 3 * KAp

    W1T = jnp.zeros((N1, P), f32)
    B1T = jnp.zeros((N1, 1), f32)
    if wh:
        W1T = W1T.at[:H, :S].set(params["w1"].T.astype(f32))
        B1T = B1T.at[:H].set(params["b1"].T.astype(f32))
    # Expand key weights per agent: column k*A + a == wk[:, k].
    wk_exp = jnp.repeat(params["wk"].astype(f32), A, axis=1)      # (S, KA)
    bk_exp = jnp.repeat(params["bk"].astype(f32), A, axis=1)      # (1, KA)
    W1T = W1T.at[nh:nh + KA, :S].set(wk_exp.T)
    B1T = B1T.at[nh:nh + KA].set(bk_exp.T)
    W1T = W1T.at[nh + KAp:nh + KAp + KA, :S].set(params["wa"].T.astype(f32))
    B1T = B1T.at[nh + KAp:nh + KAp + KA].set(params["ba"].T.astype(f32))
    W1T = W1T.at[nh + 2 * KAp:nh + 2 * KAp + KA, :S + AD].set(
        params["wact"].T.astype(f32))
    B1T = B1T.at[nh + 2 * KAp:nh + 2 * KAp + KA].set(params["bact"].T.astype(f32))

    # 0/1 summation matrix: adv_w[a] = sum_k w3[k*A + a]; pad rows/cols zero.
    esum = np.zeros((Ap, KAp), np.float32)
    for k in range(K):
        esum[np.arange(A), k * A + np.arange(A)] = 1.0

    pk = dict(W1T=W1T, B1T=B1T, EsumT=jnp.asarray(esum),
              off_d=off_d, P=P, Ap=Ap, KAp=KAp)
    if wh:
        W2T = jnp.zeros((Ap, H), f32).at[:A].set(params["w2"].T.astype(f32))
        B2T = jnp.zeros((Ap, 1), f32).at[:A].set(params["b2"].T.astype(f32))
        pk.update(W2T=W2T, B2T=B2T)
    return pk


def _pack_v_params(params, cfg):
    A, S, H = cfg["n_agents"], cfg["state_dim"], cfg["hypernet_embed"]
    f32 = jnp.float32
    Ap = _round_up(A, 8)
    off_q = _round_up(S, 8)
    P = off_q + Ap

    W1T = jnp.zeros((2 * H, P), f32)
    W1T = W1T.at[:H, :S].set(params["w1"].T.astype(f32))
    W1T = W1T.at[H:, :S].set(params["v1"].T.astype(f32))
    B1T = jnp.concatenate([params["b1"], params["bv1"]], axis=1).T.astype(f32)

    W2T = jnp.zeros((2 * Ap, 2 * H), f32)
    W2T = W2T.at[:A, :H].set(params["w2"].T.astype(f32))
    W2T = W2T.at[Ap:Ap + A, H:].set(params["v2"].T.astype(f32))
    B2T = jnp.zeros((2 * Ap, 1), f32)
    B2T = B2T.at[:A].set(params["b2"].T.astype(f32))
    B2T = B2T.at[Ap:Ap + A].set(params["bv2"].T.astype(f32))
    return dict(W1T=W1T, B1T=B1T, W2T=W2T, B2T=B2T, off_q=off_q, P=P, Ap=Ap)


# ------------------------------ Wrapper ----------------------------------------
def dmaq_forward(agent_qs, states, actions=None, max_q_i=None, params=None,
                 cfg=None, is_v=False, tile_b=None):
    """Mirrors DMAQer.forward. agent_qs: (bs, T, A), states: (bs, T, S),
    actions: (bs, T, A, n_actions), max_q_i: (bs, T, A). Returns (bs, T, 1).
    tile_b: batch rows per grid step (multiple of 128); on v5e/v6e larger
    values (e.g. 8192) are fine, the default targets all generations."""
    bs = agent_qs.shape[0]
    A, S, AD = cfg["n_agents"], cfg["state_dim"], cfg["action_dim"]
    H = cfg["hypernet_embed"]
    wh = bool(cfg["weighted_head"])
    f32 = jnp.float32
    Ap = _round_up(A, 8)

    qs_f = agent_qs.reshape(-1, A).astype(f32)
    B = qs_f.shape[0]

    # Big tiles amortize the ~0.35us/step pipeline overhead; keep >= 2 grid
    # steps when possible so both v7x TensorCores get work ("parallel" axis).
    if tile_b is None:
        tile_b = min(4096, max(128, _round_up(pl.cdiv(B, 2), 128)))
    tile_b = max(128, _round_up(tile_b, 128))
    B_pad = _round_up(B, tile_b)
    grid = (B_pad // tile_b,)

    def to_lanes(x_row_major):          # (B, P) -> (P, B_pad), batch in lanes
        x = x_row_major.T
        return x if B_pad == B else jnp.pad(x, ((0, 0), (0, B_pad - B)))

    const = lambda a: pl.BlockSpec(a.shape, lambda i: (0, 0))
    stream = lambda p: pl.BlockSpec((p, tile_b), lambda i: (0, i))
    out_spec = pl.BlockSpec((1, tile_b), lambda i: (0, i))
    cparams = pltpu.CompilerParams(
        dimension_semantics=("parallel",),
        vmem_limit_bytes=32 * 1024 * 1024,
    )

    if is_v:
        if wh:
            pk = _pack_v_params(params, cfg)
            P, off_q = pk["P"], pk["off_q"]
            states_f = states.reshape(-1, S).astype(f32)
            xr = jnp.zeros((B, P), f32)
            xr = xr.at[:, :S].set(states_f)
            xr = xr.at[:, off_q:off_q + A].set(qs_f)
            inputs = (to_lanes(xr), pk["W1T"], pk["B1T"], pk["W2T"], pk["B2T"])
            kernel = functools.partial(_dmaq_v_kernel, Ap, H, off_q, True)
        else:
            # No hypernet needed: v_tot is just the row-sum of agent_qs.
            P = Ap
            xr = jnp.zeros((B, P), f32).at[:, :A].set(qs_f)
            inputs = (to_lanes(xr),)
            kernel = functools.partial(_dmaq_v_kernel, Ap, H, 0, False)
    else:
        pk = _pack_adv_params(params, cfg)
        P, off_d, KAp = pk["P"], pk["off_d"], pk["KAp"]
        states_f = states.reshape(-1, S).astype(f32)
        actions_f = actions.reshape(-1, AD).astype(f32)
        maxq_f = max_q_i.reshape(-1, A).astype(f32)
        xr = jnp.zeros((B, P), f32)
        xr = xr.at[:, :S].set(states_f)
        xr = xr.at[:, S:S + AD].set(actions_f)
        # The "+v" terms cancel in adv_q, only the difference is needed.
        xr = xr.at[:, off_d:off_d + A].set(qs_f - maxq_f)
        if wh:
            inputs = (to_lanes(xr), pk["W1T"], pk["B1T"],
                      pk["W2T"], pk["B2T"], pk["EsumT"])
        else:
            inputs = (to_lanes(xr), pk["W1T"], pk["B1T"], pk["EsumT"])
        kernel = functools.partial(_dmaq_adv_kernel, Ap, H, KAp, off_d,
                                   bool(cfg["is_minus_one"]), wh)

    in_specs = [stream(P)] + [const(a) for a in inputs[1:]]

    y = pl.pallas_call(
        kernel,
        out_shape=jax.ShapeDtypeStruct((1, B_pad), jnp.float32),
        grid=grid,
        in_specs=in_specs,
        out_specs=out_spec,
        compiler_params=cparams,
    )(*inputs)

    return y[0, :B].reshape(bs, -1, 1)


# -------------------------- Pure-JAX reference --------------------------------
def dmaq_forward_ref(agent_qs, states, actions, max_q_i, params, cfg, is_v=False):
    bs = agent_qs.shape[0]
    A, S, AD, K = cfg["n_agents"], cfg["state_dim"], cfg["action_dim"], cfg["num_kernel"]
    s = states.reshape(-1, S).astype(jnp.float32)
    qs = agent_qs.reshape(-1, A).astype(jnp.float32)
    mq = max_q_i.reshape(-1, A).astype(jnp.float32)
    act = actions.reshape(-1, AD).astype(jnp.float32)

    h = jax.nn.relu(s @ params["w1"] + params["b1"])
    w_final = jnp.abs(h @ params["w2"] + params["b2"]) + 1e-10
    hv = jax.nn.relu(s @ params["v1"] + params["bv1"])
    v = hv @ params["v2"] + params["bv2"]
    if cfg["weighted_head"]:
        qs = w_final * qs + v
    if is_v:
        return jnp.sum(qs, axis=-1).reshape(bs, -1, 1)
    if cfg["weighted_head"]:
        mq = w_final * mq + v
    adv_q = qs - mq
    data = jnp.concatenate([s, act], axis=1)
    key = jnp.abs(s @ params["wk"] + params["bk"]) + 1e-10          # (B, K)
    ag = jax.nn.sigmoid(s @ params["wa"] + params["ba"]).reshape(-1, K, A)
    ac = jax.nn.sigmoid(data @ params["wact"] + params["bact"]).reshape(-1, K, A)
    w = key[:, :, None] * ag * ac
    adv_w = jnp.sum(w, axis=1)
    if cfg["is_minus_one"]:
        out = jnp.sum(adv_q * (adv_w - 1.0), axis=1)
    else:
        out = jnp.sum(adv_q * adv_w, axis=1)
    return out.reshape(bs, -1, 1)


# ------------------------------- Main ----------------------------------------
def _linear_init(key, fan_in, fan_out):
    kw, kb = jax.random.split(key)
    bound = 1.0 / np.sqrt(fan_in)
    w = jax.random.uniform(kw, (fan_in, fan_out), jnp.float32, -bound, bound)
    b = jax.random.uniform(kb, (1, fan_out), jnp.float32, -bound, bound)
    return w, b


def _check(got, want, shape):
    np.testing.assert_allclose(np.asarray(got), np.asarray(want),
                               rtol=5e-5, atol=5e-5)
    assert got.shape == shape


if __name__ == "__main__":
    cfg = dict(
        n_agents=4, n_actions=6, state_dim=32, hypernet_embed=64,
        num_kernel=4, weighted_head=True, is_minus_one=True,
    )
    cfg["action_dim"] = cfg["n_agents"] * cfg["n_actions"]

    A, S, AD, H, K = (cfg["n_agents"], cfg["state_dim"], cfg["action_dim"],
                      cfg["hypernet_embed"], cfg["num_kernel"])

    key = jax.random.PRNGKey(0)
    ks = jax.random.split(key, 16)

    params = {}
    params["w1"], params["b1"] = _linear_init(ks[0], S, H)
    params["w2"], params["b2"] = _linear_init(ks[1], H, A)
    params["v1"], params["bv1"] = _linear_init(ks[2], S, H)
    params["v2"], params["bv2"] = _linear_init(ks[3], H, A)
    params["wk"], params["bk"] = _linear_init(ks[4], S, K)               # keys
    params["wa"], params["ba"] = _linear_init(ks[5], S, K * A)           # agents
    params["wact"], params["bact"] = _linear_init(ks[6], S + AD, K * A)  # actions

    # -------- Case 1: small shapes (single tile, default tile_b) --------
    bs, T = 2, 4
    agent_qs = jax.random.normal(ks[7], (bs, T, A), jnp.float32)
    states = jax.random.normal(ks[8], (bs, T, S), jnp.float32)
    actions = jax.random.uniform(ks[9], (bs, T, A, cfg["n_actions"]), jnp.float32)
    max_q_i = jax.random.normal(ks[10], (bs, T, A), jnp.float32)

    out_adv = jax.block_until_ready(
        dmaq_forward(agent_qs, states, actions, max_q_i, params, cfg, is_v=False))
    out_v = jax.block_until_ready(
        dmaq_forward(agent_qs, states, actions, max_q_i, params, cfg, is_v=True))
    _check(out_adv, dmaq_forward_ref(agent_qs, states, actions, max_q_i, params, cfg,
                                     is_v=False), (bs, T, 1))
    _check(out_v, dmaq_forward_ref(agent_qs, states, actions, max_q_i, params, cfg,
                                   is_v=True), (bs, T, 1))

    # -------- Case 2: multi-tile grid with ragged final tile --------
    bs2, T2 = 3, 100                          # B = 300, tile_b = 128 -> grid of 3
    agent_qs2 = jax.random.normal(ks[11], (bs2, T2, A), jnp.float32)
    states2 = jax.random.normal(ks[12], (bs2, T2, S), jnp.float32)
    actions2 = jax.random.uniform(ks[13], (bs2, T2, A, cfg["n_actions"]), jnp.float32)
    max_q_i2 = jax.random.normal(ks[14], (bs2, T2, A), jnp.float32)

    out_adv2 = jax.block_until_ready(
        dmaq_forward(agent_qs2, states2, actions2, max_q_i2, params, cfg,
                     is_v=False, tile_b=128))
    out_v2 = jax.block_until_ready(
        dmaq_forward(agent_qs2, states2, actions2, max_q_i2, params, cfg,
                     is_v=True, tile_b=128))
    _check(out_adv2, dmaq_forward_ref(agent_qs2, states2, actions2, max_q_i2, params,
                                      cfg, is_v=False), (bs2, T2, 1))
    _check(out_v2, dmaq_forward_ref(agent_qs2, states2, actions2, max_q_i2, params,
                                    cfg, is_v=True), (bs2, T2, 1))

    # -------- Case 3: weighted_head=False / is_minus_one=False variants --------
    cfg2 = dict(cfg, weighted_head=False, is_minus_one=False)
    out_adv3 = jax.block_until_ready(
        dmaq_forward(agent_qs, states, actions, max_q_i, params, cfg2, is_v=False))
    out_v3 = jax.block_until_ready(
        dmaq_forward(agent_qs, states, actions, max_q_i, params, cfg2, is_v=True))
    _check(out_adv3, dmaq_forward_ref(agent_qs, states, actions, max_q_i, params, cfg2,
                                      is_v=False), (bs, T, 1))
    _check(out_v3, dmaq_forward_ref(agent_qs, states, actions, max_q_i, params, cfg2,
                                    is_v=True), (bs, T, 1))

    print("KERNEL_OK")
</pallas_src>

<mosaic_0001>
module attributes {stable_mosaic.version = 11 : i64} {
  func.func @_dmaq_adv_kernel(%arg0: i32, %arg1: memref<64x128xf32, #tpu.memory_space<vmem>>, %arg2: memref<112x64xf32, #tpu.memory_space<vmem>>, %arg3: memref<112x1xf32, #tpu.memory_space<vmem>>, %arg4: memref<8x64xf32, #tpu.memory_space<vmem>>, %arg5: memref<8x1xf32, #tpu.memory_space<vmem>>, %arg6: memref<8x16xf32, #tpu.memory_space<vmem>>, %arg7: memref<1x128xf32, #tpu.memory_space<vmem>>) attributes {dimension_semantics = [#tpu.dimension_semantics<parallel>], iteration_bounds = array<i64: 1>, scalar_prefetch = 0 : i64, scratch_operands = 0 : i64, tpu.core_type = #tpu.core_type<tc>, window_params = [{transform_indices = @transform_0, window_bounds = array<i64: 64, 128>}, {pipeline_mode = #tpu.pipeline_mode<synchronous>, transform_indices = @transform_1, window_bounds = array<i64: 112, 64>}, {pipeline_mode = #tpu.pipeline_mode<synchronous>, transform_indices = @transform_2, window_bounds = array<i64: 112, 1>}, {pipeline_mode = #tpu.pipeline_mode<synchronous>, transform_indices = @transform_3, window_bounds = array<i64: 8, 64>}, {pipeline_mode = #tpu.pipeline_mode<synchronous>, transform_indices = @transform_4, window_bounds = array<i64: 8, 1>}, {pipeline_mode = #tpu.pipeline_mode<synchronous>, transform_indices = @transform_5, window_bounds = array<i64: 8, 16>}, {transform_indices = @transform_6, window_bounds = array<i64: 1, 128>}]} {
    %c0 = arith.constant 0 : index
    %c0_0 = arith.constant 0 : index
    %0 = vector.load %arg1[%c0, %c0_0] : memref<64x128xf32, #tpu.memory_space<vmem>>, vector<64x128xf32>
    %c0_1 = arith.constant 0 : index
    %c0_2 = arith.constant 0 : index
    %1 = vector.load %arg2[%c0_1, %c0_2] : memref<112x64xf32, #tpu.memory_space<vmem>>, vector<112x64xf32>
    %cst = arith.constant dense<0.000000e+00> : vector<112x128xf32>
    %2 = tpu.matmul %1, %0, %cst {dimension_numbers = #tpu.dot_dimension_numbers<[1], [0], [0], [1], [0, 0, 1, 1], [], []>} : vector<112x64xf32>, vector<64x128xf32>, vector<112x128xf32> -> vector<112x128xf32>
    %c0_3 = arith.constant 0 : index
    %c0_4 = arith.constant 0 : index
    %3 = vector.load %arg3[%c0_3, %c0_4] : memref<112x1xf32, #tpu.memory_space<vmem>>, vector<112x1xf32>
    %4 = vector.broadcast %3 : vector<112x1xf32> to vector<112x128xf32>
    %5 = arith.addf %2, %4 : vector<112x128xf32>
    %6 = vector.extract_strided_slice %5 {offsets = [64, 0], sizes = [16, 128], strides = [1, 1]} : vector<112x128xf32> to vector<16x128xf32>
    %7 = math.absf %6 : vector<16x128xf32>
    %cst_5 = arith.constant 1.000000e-10 : f32
    %8 = vector.broadcast %cst_5 : f32 to vector<16x128xf32>
    %9 = arith.addf %7, %8 : vector<16x128xf32>
    %10 = vector.extract_strided_slice %5 {offsets = [80, 0], sizes = [16, 128], strides = [1, 1]} : vector<112x128xf32> to vector<16x128xf32>
    %11 = arith.negf %10 : vector<16x128xf32>
    %12 = math.exp %11 : vector<16x128xf32>
    %cst_6 = arith.constant 1.000000e+00 : f32
    %13 = vector.broadcast %cst_6 : f32 to vector<16x128xf32>
    %14 = arith.addf %13, %12 : vector<16x128xf32>
    %15 = arith.divf %13, %14 : vector<16x128xf32>
    %16 = vector.extract_strided_slice %5 {offsets = [96, 0], sizes = [16, 128], strides = [1, 1]} : vector<112x128xf32> to vector<16x128xf32>
    %17 = arith.negf %16 : vector<16x128xf32>
    %18 = math.exp %17 : vector<16x128xf32>
    %cst_7 = arith.constant 1.000000e+00 : f32
    %19 = vector.broadcast %cst_7 : f32 to vector<16x128xf32>
    %20 = arith.addf %19, %18 : vector<16x128xf32>
    %21 = arith.divf %19, %20 : vector<16x128xf32>
    %c0_8 = arith.constant 0 : index
    %c0_9 = arith.constant 0 : index
    %22 = vector.load %arg6[%c0_8, %c0_9] : memref<8x16xf32, #tpu.memory_space<vmem>>, vector<8x16xf32>
    %23 = arith.mulf %9, %15 : vector<16x128xf32>
    %24 = arith.mulf %23, %21 : vector<16x128xf32>
    %cst_10 = arith.constant dense<0.000000e+00> : vector<8x128xf32>
    %25 = tpu.matmul %22, %24, %cst_10 {dimension_numbers = #tpu.dot_dimension_numbers<[1], [0], [0], [1], [0, 0, 1, 1], [], []>} : vector<8x16xf32>, vector<16x128xf32>, vector<8x128xf32> -> vector<8x128xf32>
    %26 = vector.extract_strided_slice %0 {offsets = [56, 0], sizes = [8, 128], strides = [1, 1]} : vector<64x128xf32> to vector<8x128xf32>
    %27 = vector.extract_strided_slice %5 {offsets = [0, 0], sizes = [64, 128], strides = [1, 1]} : vector<112x128xf32> to vector<64x128xf32>
    %cst_11 = arith.constant 0.000000e+00 : f32
    %28 = vector.broadcast %cst_11 : f32 to vector<64x128xf32>
    %29 = arith.maximumf %27, %28 : vector<64x128xf32>
    %c0_12 = arith.constant 0 : index
    %c0_13 = arith.constant 0 : index
    %30 = vector.load %arg4[%c0_12, %c0_13] : memref<8x64xf32, #tpu.memory_space<vmem>>, vector<8x64xf32>
    %cst_14 = arith.constant dense<0.000000e+00> : vector<8x128xf32>
    %31 = tpu.matmul %30, %29, %cst_14 {dimension_numbers = #tpu.dot_dimension_numbers<[1], [0], [0], [1], [0, 0, 1, 1], [], []>} : vector<8x64xf32>, vector<64x128xf32>, vector<8x128xf32> -> vector<8x128xf32>
    %c0_15 = arith.constant 0 : index
    %c0_16 = arith.constant 0 : index
    %32 = vector.load %arg5[%c0_15, %c0_16] : memref<8x1xf32, #tpu.memory_space<vmem>>, vector<8x1xf32>
    %33 = vector.broadcast %32 : vector<8x1xf32> to vector<8x128xf32>
    %34 = arith.addf %31, %33 : vector<8x128xf32>
    %35 = math.absf %34 : vector<8x128xf32>
    %cst_17 = arith.constant 1.000000e-10 : f32
    %36 = vector.broadcast %cst_17 : f32 to vector<8x128xf32>
    %37 = arith.addf %35, %36 : vector<8x128xf32>
    %38 = arith.mulf %37, %26 : vector<8x128xf32>
    %cst_18 = arith.constant 1.000000e+00 : f32
    %39 = vector.broadcast %cst_18 : f32 to vector<8x128xf32>
    %40 = arith.subf %25, %39 : vector<8x128xf32>
    %41 = arith.mulf %38, %40 : vector<8x128xf32>
    %cst_19 = arith.constant dense<0.000000e+00> : vector<128xf32>
    %42 = vector.multi_reduction <add>, %41, %cst_19 [0] : vector<8x128xf32> to vector<128xf32>
    %43 = vector.shape_cast %42 : vector<128xf32> to vector<1x128xf32>
    %c0_20 = arith.constant 0 : index
    %c0_21 = arith.constant 0 : index
    %44 = vector.load %arg7[%c0_20, %c0_21] : memref<1x128xf32, #tpu.memory_space<vmem>>, vector<1x128xf32>
    tpu.vector_store %arg7[%c0_20, %c0_21], %43 {strides = array<i32>} : memref<1x128xf32, #tpu.memory_space<vmem>>, vector<1x128xf32>,
    return
  }
  func.func @transform_0(%arg0: i32) -> (i32, i32) {
    %c0_i32 = arith.constant 0 : i32
    %c0_i32_0 = arith.constant 0 : i32
    return %c0_i32, %arg0 : i32, i32
  }
  func.func @transform_1(%arg0: i32) -> (i32, i32) {
    %c0_i32 = arith.constant 0 : i32
    %c0_i32_0 = arith.constant 0 : i32
    %c0_i32_1 = arith.constant 0 : i32
    return %c0_i32, %c0_i32_0 : i32, i32
  }
  func.func @transform_2(%arg0: i32) -> (i32, i32) {
    %c0_i32 = arith.constant 0 : i32
    %c0_i32_0 = arith.constant 0 : i32
    %c0_i32_1 = arith.constant 0 : i32
    return %c0_i32, %c0_i32_0 : i32, i32
  }
  func.func @transform_3(%arg0: i32) -> (i32, i32) {
    %c0_i32 = arith.constant 0 : i32
    %c0_i32_0 = arith.constant 0 : i32
    %c0_i32_1 = arith.constant 0 : i32
    return %c0_i32, %c0_i32_0 : i32, i32
  }
  func.func @transform_4(%arg0: i32) -> (i32, i32) {
    %c0_i32 = arith.constant 0 : i32
    %c0_i32_0 = arith.constant 0 : i32
    %c0_i32_1 = arith.constant 0 : i32
    return %c0_i32, %c0_i32_0 : i32, i32
  }
  func.func @transform_5(%arg0: i32) -> (i32, i32) {
    %c0_i32 = arith.constant 0 : i32
    %c0_i32_0 = arith.constant 0 : i32
    %c0_i32_1 = arith.constant 0 : i32
    return %c0_i32, %c0_i32_0 : i32, i32
  }
  func.func @transform_6(%arg0: i32) -> (i32, i32) {
    %c0_i32 = arith.constant 0 : i32
    %c0_i32_0 = arith.constant 0 : i32
    return %c0_i32, %arg0 : i32, i32
  }
}

</mosaic_0001>

<llo_original>
// kernel: tpu_custom_call.1
$region0: #{tpu_custom_call.1}
  #allocation0 [shape = 'u32[]', space=smem, size = 0x4, offset = 0x4, fixed_abs, tag = 'smem constant byte address 0x4 - core index']
  #allocation1 [shape = 'u32[144,128]{1,0:T(1,128)}', space=vmem, size = 0x12000, scoped, tag = 'internal scratch']
  %s0 = inlined_call_operand.vmem [shape: f32[64,128], index: 0, kind: input, shape index: {}]
  %s1 = inlined_call_operand.vmem [shape: f32[112,64], index: 1, kind: input, shape index: {}]
  %s2 = inlined_call_operand.vmem [shape: f32[112,1], index: 2, kind: input, shape index: {}]
  %s3 = inlined_call_operand.vmem [shape: f32[8,64], index: 3, kind: input, shape index: {}]
  %s4 = inlined_call_operand.vmem [shape: f32[8,1], index: 4, kind: input, shape index: {}]
  %s5 = inlined_call_operand.vmem [shape: f32[8,16], index: 5, kind: input, shape index: {}]
  %s6 = inlined_call_operand.hbm [shape: f32[1,128], index: 6, kind: output, shape index: {}]
  %s7 = sld [smem:[#allocation0]]
  $region34: #{tpu_custom_call.1} parent=0
    _
  %s9 = ssub.s32 1, %s7
  %s10 = scalar_select 0, %s9, %s7
  $region1: #{tpu_custom_call.1} parent=0
    #allocation2 [shape = 'u8[512]{0}', space=vmem, size = 0x400, scoped, tag = 'output window, operand 0, single buffered']
    #allocation3 [shape = 's32[1]{0}', space=sflag, size = 0x4, scoped, tag = 'scoped memory for tpu_custom_call.1']
    %11 = vsyncpa [#allocation3], 0
    // Predicated region
    $region2: #{tpu_custom_call.1} parent=1 // pred_check
      _
    $region3: #{tpu_custom_call.1} parent=1 // pred_check_branch
      %13 = sbr.rel (0) target = $region5
    $region4: #{tpu_custom_call.1} parent=1 // pred_region
      _
    $region5: #{tpu_custom_call.1} parent=1 // pred_fallthru
      _
    // Predicated region
    $region6: #{tpu_custom_call.1} parent=1 // pred_check
      _
    $region7: #{tpu_custom_call.1} parent=1 // pred_check_branch
      %15 = sbr.rel (0) target = $region9
    $region8: #{tpu_custom_call.1} parent=1 // pred_region
      _
    $region9: #{tpu_custom_call.1} parent=1 // pred_fallthru
      _
    // Predicated region
    $region10: #{tpu_custom_call.1} parent=1 // pred_check
      _
    $region11: #{tpu_custom_call.1} parent=1 // pred_check_branch
      %17 = sbr.rel (0) target = $region13
    $region12: #{tpu_custom_call.1} parent=1 // pred_region
      _
    $region13: #{tpu_custom_call.1} parent=1 // pred_fallthru
      _
    // Predicated region
    $region14: #{tpu_custom_call.1} parent=1 // pred_check
      _
    $region15: #{tpu_custom_call.1} parent=1 // pred_check_branch
      %19 = sbr.rel (0) target = $region17
    $region16: #{tpu_custom_call.1} parent=1 // pred_region
      _
    $region17: #{tpu_custom_call.1} parent=1 // pred_fallthru
      _
    // Predicated region
    $region18: #{tpu_custom_call.1} parent=1 // pred_check
      _
    $region19: #{tpu_custom_call.1} parent=1 // pred_check_branch
      %21 = sbr.rel (0) target = $region21
    $region20: #{tpu_custom_call.1} parent=1 // pred_region
      _
    $region21: #{tpu_custom_call.1} parent=1 // pred_fallthru
      _
    // Predicated region
    $region22: #{tpu_custom_call.1} parent=1 // pred_check
      _
    $region23: #{tpu_custom_call.1} parent=1 // pred_check_branch
      %23 = sbr.rel (0) target = $region25
    $region24: #{tpu_custom_call.1} parent=1 // pred_region
      _
    $region25: #{tpu_custom_call.1} parent=1 // pred_fallthru
      _
    %v24 = vld [vmem:[%s0] sm:$0xff]
    %v25 = vld [vmem:[%s0 + $0x8] sm:$0xff]
    %v26 = vld [vmem:[%s0 + $0x10] sm:$0xff]
    %v27 = vld [vmem:[%s0 + $0x18] sm:$0xff]
    %v28 = vld [vmem:[%s0 + $0x20] sm:$0xff]
    %v29 = vld [vmem:[%s0 + $0x28] sm:$0xff]
    %v30 = vld [vmem:[%s0 + $0x30] sm:$0xff]
    %v31 = vld [vmem:[%s0 + $0x38] sm:$0xff]
    %v32 = vld [vmem:[%s1] sm:$0xff]
    %v33 = vld [vmem:[%s1 + $0x8] sm:$0xff]
    %v34 = vld [vmem:[%s1 + $0x10] sm:$0xff]
    %v35 = vld [vmem:[%s1 + $0x18] sm:$0xff]
    %v36 = vld [vmem:[%s1 + $0x20] sm:$0xff]
    %v37 = vld [vmem:[%s1 + $0x28] sm:$0xff]
    %v38 = vld [vmem:[%s1 + $0x30] sm:$0xff]
    %v39 = vld [vmem:[%s1 + $0x38] sm:$0xff]
    %v40 = vld [vmem:[%s1 + $0x40] sm:$0xff]
    %v41 = vld [vmem:[%s1 + $0x48] sm:$0xff]
    %v42 = vld [vmem:[%s1 + $0x50] sm:$0xff]
    %v43 = vld [vmem:[%s1 + $0x58] sm:$0xff]
    %v44 = vld [vmem:[%s1 + $0x60] sm:$0xff]
    %v45 = vld [vmem:[%s1 + $0x68] sm:$0xff]
    %v46 = vld [vmem:[%s2] sm:$0xff]
    %v47 = vld [vmem:[%s2 + $0x8] sm:$0xff]
    %v48 = vld [vmem:[%s2 + $0x10] sm:$0xff]
    %v49 = vld [vmem:[%s2 + $0x18] sm:$0xff]
    %v50 = vld [vmem:[%s2 + $0x20] sm:$0xff]
    %v51 = vld [vmem:[%s2 + $0x28] sm:$0xff]
    %v52 = vld [vmem:[%s2 + $0x30] sm:$0xff]
    %v53 = vld [vmem:[%s2 + $0x38] sm:$0xff]
    %v54 = vld [vmem:[%s2 + $0x40] sm:$0xff]
    %v55 = vld [vmem:[%s2 + $0x48] sm:$0xff]
    %v56 = vld [vmem:[%s2 + $0x50] sm:$0xff]
    %v57 = vld [vmem:[%s2 + $0x58] sm:$0xff]
    %v58 = vld [vmem:[%s2 + $0x60] sm:$0xff]
    %v59 = vld [vmem:[%s2 + $0x68] sm:$0xff]
    %61 = vset.pattern.permute.xlu0 0
    %62 = vperm.xlu0 %61, %v46
    %v63 = vpop.permute.xlu0 %62
    %66 = vset.pattern.permute.xlu0 0
    %67 = vperm.xlu0 %66, %v47
    %v68 = vpop.permute.xlu0 %67
    %71 = vset.pattern.permute.xlu0 0
    %72 = vperm.xlu0 %71, %v48
    %v73 = vpop.permute.xlu0 %72
    %76 = vset.pattern.permute.xlu0 0
    %77 = vperm.xlu0 %76, %v49
    %v78 = vpop.permute.xlu0 %77
    %81 = vset.pattern.permute.xlu0 0
    %82 = vperm.xlu0 %81, %v50
    %v83 = vpop.permute.xlu0 %82
    %86 = vset.pattern.permute.xlu0 0
    %87 = vperm.xlu0 %86, %v51
    %v88 = vpop.permute.xlu0 %87
    %91 = vset.pattern.permute.xlu0 0
    %92 = vperm.xlu0 %91, %v52
    %v93 = vpop.permute.xlu0 %92
    %96 = vset.pattern.permute.xlu0 0
    %97 = vperm.xlu0 %96, %v53
    %v98 = vpop.permute.xlu0 %97
    %101 = vset.pattern.permute.xlu0 0
    %102 = vperm.xlu0 %101, %v54
    %v103 = vpop.permute.xlu0 %102
    %106 = vset.pattern.permute.xlu0 0
    %107 = vperm.xlu0 %106, %v55
    %v108 = vpop.permute.xlu0 %107
    %111 = vset.pattern.permute.xlu0 0
    %112 = vperm.xlu0 %111, %v56
    %v113 = vpop.permute.xlu0 %112
    %116 = vset.pattern.permute.xlu0 0
    %117 = vperm.xlu0 %116, %v57
    %v118 = vpop.permute.xlu0 %117
    %121 = vset.pattern.permute.xlu0 0
    %122 = vperm.xlu0 %121, %v58
    %v123 = vpop.permute.xlu0 %122
    %126 = vset.pattern.permute.xlu0 0
    %127 = vperm.xlu0 %126, %v59
    %v128 = vpop.permute.xlu0 %127
    %vm130 = vcmask 523264
    %v132 = vsel %vm130, %v32, 0
    %v135 = vsel %vm130, %v33, 0
    %v138 = vsel %vm130, %v34, 0
    %v141 = vsel %vm130, %v35, 0
    %v144 = vsel %vm130, %v36, 0
    %v147 = vsel %vm130, %v37, 0
    %v150 = vsel %vm130, %v38, 0
    %v153 = vsel %vm130, %v39, 0
    %v156 = vsel %vm130, %v40, 0
    %v159 = vsel %vm130, %v41, 0
    %v162 = vsel %vm130, %v42, 0
    %v165 = vsel %vm130, %v43, 0
    %v168 = vsel %vm130, %v44, 0
    %v171 = vsel %vm130, %v45, 0
    %173 = vmatprep.subr.mxu0 0.0
    %174 = vmatpush1.msra.mxu0 %v24
    %175 = vmatprep.subr.mxu0 0.0
    %176 = vmatpush1.msra.mxu0 %v25
    %177 = vmatprep.subr.mxu0 0.0
    %178 = vmatpush1.msra.mxu0 %v26
    %179 = vmatprep.subr.mxu0 0.0
    %180 = vmatpush1.msra.mxu0 %v27
    %181 = vmatprep.subr.mxu0 0.0
    %182 = vmatpush1.msra.mxu0 %v28
    %183 = vmatprep.subr.mxu0 0.0
    %184 = vmatpush1.msra.mxu0 %v29
    %185 = vmatprep.subr.mxu0 0.0
    %186 = vmatpush1.msra.mxu0 %v30
    %187 = vmatprep.subr.mxu0 0.0
    %188 = vmatpush1.msra.mxu0 %v31
    %189 = vmatprep.subr.mxu0 0.0
    %190 = vmatpush1.msra.mxu0 0.0
    %191 = vmatprep.subr.mxu0 0.0
    %192 = vmatpush1.msra.mxu0 0.0
    %193 = vmatprep.subr.mxu0 0.0
    %194 = vmatpush1.msra.mxu0 0.0
    %195 = vmatprep.subr.mxu0 0.0
    %196 = vmatpush1.msra.mxu0 0.0
    %197 = vmatprep.subr.mxu0 0.0
    %198 = vmatpush1.msra.mxu0 0.0
    %199 = vmatprep.subr.mxu0 0.0
    %200 = vmatpush1.msra.mxu0 0.0
    %201 = vmatprep.subr.mxu0 0.0
    %202 = vmatpush1.msra.mxu0 0.0
    %203 = vmatprep.subr.mxu0 0.0
    %204 = vmatpush1.msra.mxu0 0.0
    %205 = vmatprep.subr.mxu0 0.0
    %206 = vmatpush1.msra.mxu0 0.0
    %207 = vmatprep.subr.mxu0 0.0
    %208 = vmatpush1.msra.mxu0 0.0
    %209 = vmatprep.subr.mxu0 0.0
    %210 = vmatpush1.msra.mxu0 0.0
    %211 = vmatprep.subr.mxu0 0.0
    %212 = vmatpush1.msra.mxu0 0.0
    %213 = vmatprep.subr.mxu0 0.0
    %214 = vmatpush1.msra.mxu0 0.0
    %215 = vmatprep.subr.mxu0 0.0
    %216 = vmatpush1.msra.mxu0 0.0
    %217 = vmatprep.subr.mxu0 0.0
    %218 = vmatpush1.msra.mxu0 0.0
    %219 = vmatprep.subr.mxu0 0.0
    %220 = vmatpush1.msra.mxu0 0.0
    %221 = vmatprep.subr.mxu0 0.0
    %222 = vmatpush1.msra.mxu0 0.0
    %223 = vmatprep.subr.mxu0 0.0
    %224 = vmatpush1.msra.mxu0 0.0
    %225 = vmatprep.subr.mxu0 0.0
    %226 = vmatpush1.msra.mxu0 0.0
    %227 = vmatprep.subr.mxu0 0.0
    %228 = vmatpush1.msra.mxu0 0.0
    %229 = vmatprep.subr.mxu0 0.0
    %230 = vmatpush1.msra.mxu0 0.0
    %231 = vmatprep.subr.mxu0 0.0
    %232 = vmatpush1.msra.mxu0 0.0
    %233 = vmatprep.subr.mxu0 0.0
    %234 = vmatpush1.msra.mxu0 0.0
    %235 = vmatprep.subr.mxu0 0.0
    %236 = vmatpush1.msra.mxu0 0.0
    %237 = vmatprep.mubr.f32.mxu0 0.0
    %238 = vmatmul.mubr.f32.gmra.mrb[0].mxu0 %v132
    %v239 = vpop.f32.mrb[0].mxu0
    %v240 = vadd.f32 %v63, %v239
    %v241 = vpop.f32.mrb[0].mxu0
    %242 = vmatprep.mubr.f32.mxu0 0.0
    %243 = vmatmul.mubr.f32.gmra.mrb[0].mxu0 %v135
    %v244 = vpop.f32.mrb[0].mxu0
    %v245 = vadd.f32 %v68, %v244
    %v246 = vpop.f32.mrb[0].mxu0
    %247 = vmatprep.mubr.f32.mxu0 0.0
    %248 = vmatmul.mubr.f32.gmra.mrb[0].mxu0 %v138
    %v249 = vpop.f32.mrb[0].mxu0
    %v250 = vadd.f32 %v73, %v249
    %v251 = vpop.f32.mrb[0].mxu0
    %252 = vmatprep.mubr.f32.mxu0 0.0
    %253 = vmatmul.mubr.f32.gmra.mrb[0].mxu0 %v141
    %v254 = vpop.f32.mrb[0].mxu0
    %v255 = vadd.f32 %v78, %v254
    %v256 = vpop.f32.mrb[0].mxu0
    %257 = vmatprep.mubr.f32.mxu0 0.0
    %258 = vmatmul.mubr.f32.gmra.mrb[0].mxu0 %v144
    %v259 = vpop.f32.mrb[0].mxu0
    %v260 = vadd.f32 %v83, %v259
    %v261 = vpop.f32.mrb[0].mxu0
    %262 = vmatprep.mubr.f32.mxu0 0.0
    %263 = vmatmul.mubr.f32.gmra.mrb[0].mxu0 %v147
    %v264 = vpop.f32.mrb[0].mxu0
    %v265 = vadd.f32 %v88, %v264
    %v266 = vpop.f32.mrb[0].mxu0
    %267 = vmatprep.mubr.f32.mxu0 0.0
    %268 = vmatmul.mubr.f32.gmra.mrb[0].mxu0 %v150
    %v269 = vpop.f32.mrb[0].mxu0
    %v270 = vadd.f32 %v93, %v269
    %v271 = vpop.f32.mrb[0].mxu0
    %272 = vmatprep.mubr.f32.mxu0 0.0
    %273 = vmatmul.mubr.f32.gmra.mrb[0].mxu0 %v153
    %v274 = vpop.f32.mrb[0].mxu0
    %v275 = vadd.f32 %v98, %v274
    %v276 = vpop.f32.mrb[0].mxu0
    %277 = vmatprep.mubr.f32.mxu0 0.0
    %278 = vmatmul.mubr.f32.gmra.mrb[0].mxu0 %v156
    %v279 = vpop.f32.mrb[0].mxu0
    %v280 = vadd.f32 %v103, %v279
    %v281 = vpop.f32.mrb[0].mxu0
    %282 = vmatprep.mubr.f32.mxu0 0.0
    %283 = vmatmul.mubr.f32.gmra.mrb[0].mxu0 %v159
    %v284 = vpop.f32.mrb[0].mxu0
    %v285 = vadd.f32 %v108, %v284
    %v286 = vpop.f32.mrb[0].mxu0
    %287 = vmatprep.mubr.f32.mxu0 0.0
    %288 = vmatmul.mubr.f32.gmra.mrb[0].mxu0 %v162
    %v289 = vpop.f32.mrb[0].mxu0
    %v290 = vadd.f32 %v113, %v289
    %v291 = vpop.f32.mrb[0].mxu0
    %292 = vmatprep.mubr.f32.mxu0 0.0
    %293 = vmatmul.mubr.f32.gmra.mrb[0].mxu0 %v165
    %v294 = vpop.f32.mrb[0].mxu0
    %v295 = vadd.f32 %v118, %v294
    %v296 = vpop.f32.mrb[0].mxu0
    %297 = vmatprep.mubr.f32.mxu0 0.0
    %298 = vmatmul.mubr.f32.gmra.mrb[0].mxu0 %v168
    %v299 = vpop.f32.mrb[0].mxu0
    %v300 = vadd.f32 %v123, %v299
    %v301 = vpop.f32.mrb[0].mxu0
    %302 = vmatprep.mubr.f32.mxu0 0.0
    %303 = vmatmul.mubr.f32.gmra.mrb[0].mxu0 %v171
    %v304 = vpop.f32.mrb[0].mxu0
    %v305 = vadd.f32 %v128, %v304
    %v306 = vpop.f32.mrb[0].mxu0
    %307 = vdwg.mxu0
    %v308 = vand.u32 2147483647, %v280
    %v309 = vand.u32 2147483647, %v285
    %v310 = vadd.f32 %v308, 1e-10
    %v311 = vadd.f32 %v309, 1e-10
    %v312 = vxor.u32 %v290, 2147483648
    %v313 = vxor.u32 %v295, 2147483648
    %v314 = vmul.f32 %v312, 1.442695
    %v315 = vpow.pop %v314
    %v316 = vmul.f32 %v313, 1.442695
    %v317 = vpow.pop %v316
    %v318 = vadd.f32 %v315, 1.0
    %v319 = vadd.f32 %v317, 1.0
    %v320 = vrcp.pop %v318
    %v321 = vmul.f32 1.0, %v320
    %v322 = vrcp.pop %v319
    %v323 = vmul.f32 1.0, %v322
    %v324 = vxor.u32 %v300, 2147483648
    %v325 = vxor.u32 %v305, 2147483648
    %v326 = vmul.f32 %v324, 1.442695
    %v327 = vpow.pop %v326
    %v328 = vmul.f32 %v325, 1.442695
    %v329 = vpow.pop %v328
    %v330 = vadd.f32 %v327, 1.0
    %v331 = vadd.f32 %v329, 1.0
    %v332 = vrcp.pop %v330
    %v333 = vmul.f32 1.0, %v332
    %v334 = vrcp.pop %v331
    %v335 = vmul.f32 1.0, %v334
    %v336 = vld [vmem:[%s5] sm:$0xff]
    %v337 = vmul.f32 %v310, %v321
    %v338 = vmul.f32 %v311, %v323
    %v339 = vmul.f32 %v337, %v333
    %v340 = vmul.f32 %v338, %v335
    %vm341 = vcmask 130048
    %v343 = vsel %vm341, %v336, 0
    %345 = vmatprep.subr.mxu0 0.0
    %346 = vmatpush1.msra.mxu0 %v339
    %347 = vmatprep.subr.mxu0 0.0
    %348 = vmatpush1.msra.mxu0 %v340
    %349 = vmatprep.subr.mxu0 0.0
    %350 = vmatpush1.msra.mxu0 0.0
    %351 = vmatprep.subr.mxu0 0.0
    %352 = vmatpush1.msra.mxu0 0.0
    %353 = vmatprep.subr.mxu0 0.0
    %354 = vmatpush1.msra.mxu0 0.0
    %355 = vmatprep.subr.mxu0 0.0
    %356 = vmatpush1.msra.mxu0 0.0
    %357 = vmatprep.subr.mxu0 0.0
    %358 = vmatpush1.msra.mxu0 0.0
    %359 = vmatprep.subr.mxu0 0.0
    %360 = vmatpush1.msra.mxu0 0.0
    %361 = vmatprep.subr.mxu0 0.0
    %362 = vmatpush1.msra.mxu0 0.0
    %363 = vmatprep.subr.mxu0 0.0
    %364 = vmatpush1.msra.mxu0 0.0
    %365 = vmatprep.subr.mxu0 0.0
    %366 = vmatpush1.msra.mxu0 0.0
    %367 = vmatprep.subr.mxu0 0.0
    %368 = vmatpush1.msra.mxu0 0.0
    %369 = vmatprep.subr.mxu0 0.0
    %370 = vmatpush1.msra.mxu0 0.0
    %371 = vmatprep.subr.mxu0 0.0
    %372 = vmatpush1.msra.mxu0 0.0
    %373 = vmatprep.subr.mxu0 0.0
    %374 = vmatpush1.msra.mxu0 0.0
    %375 = vmatprep.subr.mxu0 0.0
    %376 = vmatpush1.msra.mxu0 0.0
    %377 = vmatprep.subr.mxu0 0.0
    %378 = vmatpush1.msra.mxu0 0.0
    %379 = vmatprep.subr.mxu0 0.0
    %380 = vmatpush1.msra.mxu0 0.0
    %381 = vmatprep.subr.mxu0 0.0
    %382 = vmatpush1.msra.mxu0 0.0
    %383 = vmatprep.subr.mxu0 0.0
    %384 = vmatpush1.msra.mxu0 0.0
    %385 = vmatprep.subr.mxu0 0.0
    %386 = vmatpush1.msra.mxu0 0.0
    %387 = vmatprep.subr.mxu0 0.0
    %388 = vmatpush1.msra.mxu0 0.0
    %389 = vmatprep.subr.mxu0 0.0
    %390 = vmatpush1.msra.mxu0 0.0
    %391 = vmatprep.subr.mxu0 0.0
    %392 = vmatpush1.msra.mxu0 0.0
    %393 = vmatprep.subr.mxu0 0.0
    %394 = vmatpush1.msra.mxu0 0.0
    %395 = vmatprep.subr.mxu0 0.0
    %396 = vmatpush1.msra.mxu0 0.0
    %397 = vmatprep.subr.mxu0 0.0
    %398 = vmatpush1.msra.mxu0 0.0
    %399 = vmatprep.subr.mxu0 0.0
    %400 = vmatpush1.msra.mxu0 0.0
    %401 = vmatprep.subr.mxu0 0.0
    %402 = vmatpush1.msra.mxu0 0.0
    %403 = vmatprep.subr.mxu0 0.0
    %404 = vmatpush1.msra.mxu0 0.0
    %405 = vmatprep.subr.mxu0 0.0
    %406 = vmatpush1.msra.mxu0 0.0
    %407 = vmatprep.subr.mxu0 0.0
    %408 = vmatpush1.msra.mxu0 0.0
    %409 = vmatprep.mubr.f32.mxu0 0.0
    %410 = vmatmul.mubr.f32.gmra.mrb[0].mxu0 %v343
    %v411 = vpop.f32.mrb[0].mxu0
    %v412 = vadd.f32 0.0, %v411
    %v413 = vpop.f32.mrb[0].mxu0
    %414 = vdwg.mxu0
    %v415 = vmax.f32 %v240, 0.0
    %v416 = vmax.f32 %v245, 0.0
    %v417 = vmax.f32 %v250, 0.0
    %v418 = vmax.f32 %v255, 0.0
    %v419 = vmax.f32 %v260, 0.0
    %v420 = vmax.f32 %v265, 0.0
    %v421 = vmax.f32 %v270, 0.0
    %v422 = vmax.f32 %v275, 0.0
    %v423 = vld [vmem:[%s3] sm:$0xff]
    %v424 = vld [vmem:[%s4] sm:$0xff]
    %426 = vset.pattern.permute.xlu0 0
    %427 = vperm.xlu0 %426, %v424
    %v428 = vpop.permute.xlu0 %427
    %v431 = vsel %vm130, %v423, 0
    %433 = vmatprep.subr.mxu0 0.0
    %434 = vmatpush1.msra.mxu0 %v415
    %435 = vmatprep.subr.mxu0 0.0
    %436 = vmatpush1.msra.mxu0 %v416
    %437 = vmatprep.subr.mxu0 0.0
    %438 = vmatpush1.msra.mxu0 %v417
    %439 = vmatprep.subr.mxu0 0.0
    %440 = vmatpush1.msra.mxu0 %v418
    %441 = vmatprep.subr.mxu0 0.0
    %442 = vmatpush1.msra.mxu0 %v419
    %443 = vmatprep.subr.mxu0 0.0
    %444 = vmatpush1.msra.mxu0 %v420
    %445 = vmatprep.subr.mxu0 0.0
    %446 = vmatpush1.msra.mxu0 %v421
    %447 = vmatprep.subr.mxu0 0.0
    %448 = vmatpush1.msra.mxu0 %v422
    %449 = vmatprep.subr.mxu0 0.0
    %450 = vmatpush1.msra.mxu0 0.0
    %451 = vmatprep.subr.mxu0 0.0
    %452 = vmatpush1.msra.mxu0 0.0
    %453 = vmatprep.subr.mxu0 0.0
    %454 = vmatpush1.msra.mxu0 0.0
    %455 = vmatprep.subr.mxu0 0.0
    %456 = vmatpush1.msra.mxu0 0.0
    %457 = vmatprep.subr.mxu0 0.0
    %458 = vmatpush1.msra.mxu0 0.0
    %459 = vmatprep.subr.mxu0 0.0
    %460 = vmatpush1.msra.mxu0 0.0
    %461 = vmatprep.subr.mxu0 0.0
    %462 = vmatpush1.msra.mxu0 0.0
    %463 = vmatprep.subr.mxu0 0.0
    %464 = vmatpush1.msra.mxu0 0.0
    %465 = vmatprep.subr.mxu0 0.0
    %466 = vmatpush1.msra.mxu0 0.0
    %467 = vmatprep.subr.mxu0 0.0
    %468 = vmatpush1.msra.mxu0 0.0
    %469 = vmatprep.subr.mxu0 0.0
    %470 = vmatpush1.msra.mxu0 0.0
    %471 = vmatprep.subr.mxu0 0.0
    %472 = vmatpush1.msra.mxu0 0.0
    %473 = vmatprep.subr.mxu0 0.0
    %474 = vmatpush1.msra.mxu0 0.0
    %475 = vmatprep.subr.mxu0 0.0
    %476 = vmatpush1.msra.mxu0 0.0
    %477 = vmatprep.subr.mxu0 0.0
    %478 = vmatpush1.msra.mxu0 0.0
    %479 = vmatprep.subr.mxu0 0.0
    %480 = vmatpush1.msra.mxu0 0.0
    %481 = vmatprep.subr.mxu0 0.0
    %482 = vmatpush1.msra.mxu0 0.0
    %483 = vmatprep.subr.mxu0 0.0
    %484 = vmatpush1.msra.mxu0 0.0
    %485 = vmatprep.subr.mxu0 0.0
    %486 = vmatpush1.msra.mxu0 0.0
    %487 = vmatprep.subr.mxu0 0.0
    %488 = vmatpush1.msra.mxu0 0.0
    %489 = vmatprep.subr.mxu0 0.0
    %490 = vmatpush1.msra.mxu0 0.0
    %491 = vmatprep.subr.mxu0 0.0
    %492 = vmatpush1.msra.mxu0 0.0
    %493 = vmatprep.subr.mxu0 0.0
    %494 = vmatpush1.msra.mxu0 0.0
    %495 = vmatprep.subr.mxu0 0.0
    %496 = vmatpush1.msra.mxu0 0.0
    %497 = vmatprep.mubr.f32.mxu0 0.0
    %498 = vmatmul.mubr.f32.gmra.mrb[0].mxu0 %v431
    %v499 = vpop.f32.mrb[0].mxu0
    %v500 = vadd.f32 %v428, %v499
    %v501 = vpop.f32.mrb[0].mxu0
    %502 = vdwg.mxu0
    %v503 = vand.u32 2147483647, %v500
    %v504 = vadd.f32 %v503, 1e-10
    %v505 = vmul.f32 %v504, %v31
    %v506 = vsub.f32 %v412, 1.0
    %v507 = vmul.f32 %v505, %v506
    %v508 = vrot.slane %v507, 4
    %v509 = vadd.f32 %v507, %v508
    %v510 = vrot.slane %v509, 2
    %v511 = vadd.f32 %v509, %v510
    %v512 = vrot.slane %v511, 1
    %v513 = vadd.f32 %v511, %v512
    %514 = vst [vmem:[#allocation2] sm:$0x1] %v513
    // Predicated region
    $region26: #{tpu_custom_call.1} parent=1 // pred_check
      _
    $region27: #{tpu_custom_call.1} parent=1 // pred_check_branch
      %516 = sbr.rel (0) target = $region29
    $region28: #{tpu_custom_call.1} parent=1 // pred_region
      %s518 = ssub.s32 16, 16
      %519 = vsyncadd [#allocation3], %s518
      %s521 = sshll.u32 [#allocation2], 4
      %s522 = int_to_ptr.vmem [resolvable:$true] %s521
      %524 = dma.vmem_to_hbm [thread:$0]  %s522, 16, %s6, [#allocation3]
    $region29: #{tpu_custom_call.1} parent=1 // pred_fallthru
      _
    // Predicated region
    $region30: #{tpu_custom_call.1} parent=1 // pred_check
      _
    $region31: #{tpu_custom_call.1} parent=1 // pred_check_branch
      %526 = sbr.rel (0) target = $region33
    $region32: #{tpu_custom_call.1} parent=1 // pred_region
      %527 = dma.done [#allocation3], 16
    $region33: #{tpu_custom_call.1} parent=1 // pred_fallthru
      _
    %528 = vsyncpa [#allocation3], 1

</llo_original>
